<compile_context>
chip_gen: v6e
topology: v6e:2x2x1
jax: 0.10.0
libtpu: 0.0.40
codegen_flags: <defaults>
</compile_context>

<pallas_src>
import functools

import jax
import jax.numpy as jnp
from jax.experimental import pallas as pl
from jax.experimental.pallas import tpu as pltpu


def _round_up(x, m):
    return (x + m - 1) // m * m


def critic_kernel(sa_ref, w1_ref, w2x_ref, w2a_ref, w3_ref,
                  b1_ref, b2_ref, b3_ref, out_ref, *, s_dim, s_off, a_dim):
    # Packed bf16 input tile (batch on lanes): rows [0, S) = state.T,
    # rows [s_off, s_off + A) = action.T.  s_off is 16-aligned -> aligned sublane slices.
    s_t = sa_ref[0:s_dim, :]                      # (S, tm)  bf16
    a_t = sa_ref[s_off:s_off + a_dim, :]          # (A, tm)  bf16

    # fc1: (H1, S) @ (S, tm) on the MXU, bf16 operands, f32 accumulate.
    h1 = jnp.dot(w1_ref[...], s_t, preferred_element_type=jnp.float32)    # (H1, tm)
    h1 = jnp.maximum(h1 + b1_ref[...], 0.0)       # bias bcast over lanes; ReLU on VPU

    # fc2 on cat([h1, action], dim=1), expressed as a split matmul (no in-kernel concat).
    h2 = (jnp.dot(w2x_ref[...], h1.astype(jnp.bfloat16),
                  preferred_element_type=jnp.float32)
          + jnp.dot(w2a_ref[...], a_t, preferred_element_type=jnp.float32))  # (H2, tm)
    h2 = jnp.maximum(h2 + b2_ref[...], 0.0)

    # fc3 (out_features == 1): f32 VPU multiply + sublane reduction -> lane-dense (1, tm)
    # Q row.  No 1-wide MXU push, no masked lane-sparse stores.
    q = jnp.sum(h2 * w3_ref[...], axis=0, keepdims=True) + b3_ref[...]    # (1, tm)
    out_ref[...] = q[None].astype(out_ref.dtype)                          # (1, 1, tm)


def critic_forward(state, action, params, *, tile_m=2048, core_parallel=False):
    """Fused critic forward.

    Big batch tiles on every TPU generation; grid=(1,) whenever round_up(B,128) <= tile_m.
    For very large B sweep tile_m in 512..2048 (don't push past ~8K at 32 MiB VMEM).
    Set core_parallel=True on v7x to shard the batch grid across its two TensorCores.
    """
    w1, w2x, w2a, w3, b1, b2, b3 = (params[k] for k in
                                    ("w1", "w2x", "w2a", "w3", "b1", "b2", "b3"))
    B, S = state.shape
    A = action.shape[1]
    H1 = w1.shape[0]
    H2 = w2x.shape[0]

    # --- batch tiling (batch is the lane dim, so tiles are multiples of 128) ---
    tm = max(128, _round_up(tile_m, 128))
    if _round_up(B, 128) <= tm:
        tm = _round_up(B, 128)                 # whole batch in one grid step
    Bp = _round_up(B, tm)
    num_tiles = Bp // tm

    # --- pack state + action into one lane-major bf16 slab (the only streamed input) ---
    s_off = _round_up(S, 16)                   # bf16 sublane alignment for the action rows
    rows = s_off + A
    sa = jnp.zeros((rows, Bp), jnp.bfloat16)
    sa = sa.at[:S, :B].set(state.astype(jnp.bfloat16).T)
    sa = sa.at[s_off:s_off + A, :B].set(action.astype(jnp.bfloat16).T)

    kernel = functools.partial(critic_kernel, s_dim=S, s_off=s_off, a_dim=A)

    def resident(arr):
        # Same block every grid step -> DMA'd once, stays VMEM-resident.
        return pl.BlockSpec(arr.shape, lambda i: (0, 0))

    # Advisory cost so XLA overlaps this latency-bound call with surrounding work.
    flops = 2 * Bp * (S * H1 + H1 * H2 + A * H2 + H2)
    bytes_accessed = (int(sa.size) * 2 + Bp * 4
                      + sum(int(a.size) * a.dtype.itemsize
                            for a in (w1, w2x, w2a, w3, b1, b2, b3)))

    semantics = (pltpu.CORE_PARALLEL if (core_parallel and num_tiles >= 2)
                 else pltpu.PARALLEL)

    out = pl.pallas_call(
        kernel,
        out_shape=jax.ShapeDtypeStruct((num_tiles, 1, tm), jnp.float32),
        grid=(num_tiles,),
        in_specs=[
            pl.BlockSpec((rows, tm), lambda i: (0, i)),   # streamed per grid step
            resident(w1), resident(w2x), resident(w2a), resident(w3),
            resident(b1), resident(b2), resident(b3),
        ],
        out_specs=pl.BlockSpec((1, 1, tm), lambda i: (i, 0, 0)),   # lane-dense Q rows
        compiler_params=pltpu.CompilerParams(
            dimension_semantics=(semantics,),
            vmem_limit_bytes=32 * 1024 * 1024,   # v7x scoped default; ample headroom here
        ),
        cost_estimate=pl.CostEstimate(flops=int(flops), transcendentals=0,
                                      bytes_accessed=int(bytes_accessed)),
    )(sa, w1, w2x, w2a, w3, b1, b2, b3)

    return out.reshape(Bp, 1)[:B]


def init_params(key, state_dim, action_dim, hidden1, hidden2):
    """Synthetic init mirroring the PyTorch module (weights kept in (out, in) layout)."""
    ks = jax.random.split(key, 6)

    # fc1: kaiming normal (fan_in = state_dim); bias ~ default nn.Linear.
    std1 = jnp.sqrt(2.0 / state_dim)
    w1 = jax.random.normal(ks[0], (hidden1, state_dim), jnp.float32) * std1
    bound1 = 1.0 / jnp.sqrt(state_dim)
    b1 = jax.random.uniform(ks[1], (hidden1,), jnp.float32, -bound1, bound1)

    # fc2: kaiming normal on (hidden2, hidden1 + action_dim); split into state/action halves.
    fan_in2 = hidden1 + action_dim
    std2 = jnp.sqrt(2.0 / fan_in2)
    w2 = jax.random.normal(ks[2], (hidden2, fan_in2), jnp.float32) * std2
    w2x = w2[:, :hidden1]
    w2a = w2[:, hidden1:]
    bound2 = 1.0 / jnp.sqrt(fan_in2)
    b2 = jax.random.uniform(ks[3], (hidden2,), jnp.float32, -bound2, bound2)

    # fc3: xavier uniform, bias uniform(-0.003, 0.003).
    limit3 = jnp.sqrt(6.0 / (hidden2 + 1))
    w3 = jax.random.uniform(ks[4], (hidden2,), jnp.float32, -limit3, limit3)
    b3 = jax.random.uniform(ks[5], (1,), jnp.float32, -0.003, 0.003)

    return dict(
        w1=w1.astype(jnp.bfloat16),            # (H1, S)   MXU operand
        w2x=w2x.astype(jnp.bfloat16),          # (H2, H1)  MXU operand
        w2a=w2a.astype(jnp.bfloat16),          # (H2, A)   MXU operand
        w3=w3.reshape(hidden2, 1),             # f32: used on the VPU, not the MXU
        b1=b1.reshape(hidden1, 1),
        b2=b2.reshape(hidden2, 1),
        b3=b3.reshape(1, 1),
    )


def critic_reference(state, action, params):
    """Pure-JAX reference of the PyTorch forward, with the kernel's bf16-in/f32-acc numerics."""
    w1, w2x, w2a = params["w1"], params["w2x"], params["w2a"]
    w3 = params["w3"][:, 0]
    b1 = params["b1"][:, 0]
    b2 = params["b2"][:, 0]
    b3 = params["b3"][0, 0]

    x = jnp.dot(state.astype(jnp.bfloat16), w1.T,
                preferred_element_type=jnp.float32) + b1
    x = jax.nn.relu(x)
    x = (jnp.dot(x.astype(jnp.bfloat16), w2x.T, preferred_element_type=jnp.float32)
         + jnp.dot(action.astype(jnp.bfloat16), w2a.T, preferred_element_type=jnp.float32)
         + b2)
    x = jax.nn.relu(x)
    return x @ w3.reshape(-1, 1) + b3


if __name__ == "__main__":
    key = jax.random.PRNGKey(0)

    # Config 1: small batch -> whole batch in a single grid step (grid=(1,)).
    B, S, A, H1, H2 = 64, 16, 8, 128, 128
    k1, k2, k3, key = jax.random.split(key, 4)
    state = jax.random.normal(k1, (B, S), jnp.float32)
    action = jax.random.normal(k2, (B, A), jnp.float32)
    params = init_params(k3, S, A, H1, H2)

    q = jax.block_until_ready(critic_forward(state, action, params))
    q_ref = critic_reference(state, action, params)
    assert q.shape == (B, 1)
    assert jnp.allclose(q, q_ref, atol=5e-3, rtol=5e-3), \
        float(jnp.max(jnp.abs(q - q_ref)))

    # Config 2: multi-step batch grid (grid=(3,)), non-128 hidden dims, batch padding.
    B, S, A, H1, H2 = 320, 12, 6, 96, 72
    k1, k2, k3, key = jax.random.split(key, 4)
    state = jax.random.normal(k1, (B, S), jnp.float32)
    action = jax.random.normal(k2, (B, A), jnp.float32)
    params = init_params(k3, S, A, H1, H2)

    q = jax.block_until_ready(critic_forward(state, action, params, tile_m=128))
    q_ref = critic_reference(state, action, params)
    assert q.shape == (B, 1)
    assert jnp.allclose(q, q_ref, atol=5e-3, rtol=5e-3), \
        float(jnp.max(jnp.abs(q - q_ref)))

    print("KERNEL_OK")
</pallas_src>

<mosaic_0001>
module attributes {stable_mosaic.version = 11 : i64} {
  func.func @critic_kernel(%arg0: i32, %arg1: memref<24x128xbf16, #tpu.memory_space<vmem>>, %arg2: memref<128x16xbf16, #tpu.memory_space<vmem>>, %arg3: memref<128x128xbf16, #tpu.memory_space<vmem>>, %arg4: memref<128x8xbf16, #tpu.memory_space<vmem>>, %arg5: memref<128x1xf32, #tpu.memory_space<vmem>>, %arg6: memref<128x1xf32, #tpu.memory_space<vmem>>, %arg7: memref<128x1xf32, #tpu.memory_space<vmem>>, %arg8: memref<1x1xf32, #tpu.memory_space<vmem>>, %arg9: memref<1x1x128xf32, #tpu.memory_space<vmem>>) attributes {dimension_semantics = [#tpu.dimension_semantics<parallel>], iteration_bounds = array<i64: 1>, scalar_prefetch = 0 : i64, scratch_operands = 0 : i64, tpu.core_type = #tpu.core_type<tc>, window_params = [{transform_indices = @transform_0, window_bounds = array<i64: 24, 128>}, {pipeline_mode = #tpu.pipeline_mode<synchronous>, transform_indices = @transform_1, window_bounds = array<i64: 128, 16>}, {pipeline_mode = #tpu.pipeline_mode<synchronous>, transform_indices = @transform_2, window_bounds = array<i64: 128, 128>}, {pipeline_mode = #tpu.pipeline_mode<synchronous>, transform_indices = @transform_3, window_bounds = array<i64: 128, 8>}, {pipeline_mode = #tpu.pipeline_mode<synchronous>, transform_indices = @transform_4, window_bounds = array<i64: 128, 1>}, {pipeline_mode = #tpu.pipeline_mode<synchronous>, transform_indices = @transform_5, window_bounds = array<i64: 128, 1>}, {pipeline_mode = #tpu.pipeline_mode<synchronous>, transform_indices = @transform_6, window_bounds = array<i64: 128, 1>}, {pipeline_mode = #tpu.pipeline_mode<synchronous>, transform_indices = @transform_7, window_bounds = array<i64: 1, 1>}, {transform_indices = @transform_8, window_bounds = array<i64: 1, 1, 128>}]} {
    %c0 = arith.constant 0 : index
    %c0_0 = arith.constant 0 : index
    %0 = vector.load %arg1[%c0, %c0_0] : memref<24x128xbf16, #tpu.memory_space<vmem>>, vector<16x128xbf16>
    %c16 = arith.constant 16 : index
    %c0_1 = arith.constant 0 : index
    %1 = vector.load %arg1[%c16, %c0_1] : memref<24x128xbf16, #tpu.memory_space<vmem>>, vector<8x128xbf16>
    %c0_2 = arith.constant 0 : index
    %c0_3 = arith.constant 0 : index
    %2 = vector.load %arg2[%c0_2, %c0_3] : memref<128x16xbf16, #tpu.memory_space<vmem>>, vector<128x16xbf16>
    %cst = arith.constant dense<0.000000e+00> : vector<128x128xf32>
    %3 = tpu.matmul %2, %0, %cst {dimension_numbers = #tpu.dot_dimension_numbers<[1], [0], [0], [1], [0, 0, 1, 1], [], []>} : vector<128x16xbf16>, vector<16x128xbf16>, vector<128x128xf32> -> vector<128x128xf32>
    %c0_4 = arith.constant 0 : index
    %c0_5 = arith.constant 0 : index
    %4 = vector.load %arg6[%c0_4, %c0_5] : memref<128x1xf32, #tpu.memory_space<vmem>>, vector<128x1xf32>
    %5 = vector.broadcast %4 : vector<128x1xf32> to vector<128x128xf32>
    %6 = arith.addf %3, %5 : vector<128x128xf32>
    %cst_6 = arith.constant 0.000000e+00 : f32
    %7 = vector.broadcast %cst_6 : f32 to vector<128x128xf32>
    %8 = arith.maximumf %6, %7 : vector<128x128xf32>
    %c0_7 = arith.constant 0 : index
    %c0_8 = arith.constant 0 : index
    %9 = vector.load %arg3[%c0_7, %c0_8] : memref<128x128xbf16, #tpu.memory_space<vmem>>, vector<128x128xbf16>
    %10 = arith.truncf %8 : vector<128x128xf32> to vector<128x128xbf16>
    %cst_9 = arith.constant dense<0.000000e+00> : vector<128x128xf32>
    %11 = tpu.matmul %9, %10, %cst_9 {dimension_numbers = #tpu.dot_dimension_numbers<[1], [0], [0], [1], [0, 0, 1, 1], [], []>} : vector<128x128xbf16>, vector<128x128xbf16>, vector<128x128xf32> -> vector<128x128xf32>
    %c0_10 = arith.constant 0 : index
    %c0_11 = arith.constant 0 : index
    %12 = vector.load %arg4[%c0_10, %c0_11] : memref<128x8xbf16, #tpu.memory_space<vmem>>, vector<128x8xbf16>
    %cst_12 = arith.constant dense<0.000000e+00> : vector<128x128xf32>
    %13 = tpu.matmul %12, %1, %cst_12 {dimension_numbers = #tpu.dot_dimension_numbers<[1], [0], [0], [1], [0, 0, 1, 1], [], []>} : vector<128x8xbf16>, vector<8x128xbf16>, vector<128x128xf32> -> vector<128x128xf32>
    %14 = arith.addf %11, %13 : vector<128x128xf32>
    %c0_13 = arith.constant 0 : index
    %c0_14 = arith.constant 0 : index
    %15 = vector.load %arg7[%c0_13, %c0_14] : memref<128x1xf32, #tpu.memory_space<vmem>>, vector<128x1xf32>
    %16 = vector.broadcast %15 : vector<128x1xf32> to vector<128x128xf32>
    %17 = arith.addf %14, %16 : vector<128x128xf32>
    %cst_15 = arith.constant 0.000000e+00 : f32
    %18 = vector.broadcast %cst_15 : f32 to vector<128x128xf32>
    %19 = arith.maximumf %17, %18 : vector<128x128xf32>
    %c0_16 = arith.constant 0 : index
    %c0_17 = arith.constant 0 : index
    %20 = vector.load %arg5[%c0_16, %c0_17] : memref<128x1xf32, #tpu.memory_space<vmem>>, vector<128x1xf32>
    %21 = vector.broadcast %20 : vector<128x1xf32> to vector<128x128xf32>
    %22 = arith.mulf %19, %21 : vector<128x128xf32>
    %cst_18 = arith.constant dense<0.000000e+00> : vector<128xf32>
    %23 = vector.multi_reduction <add>, %22, %cst_18 [0] : vector<128x128xf32> to vector<128xf32>
    %24 = vector.shape_cast %23 : vector<128xf32> to vector<1x128xf32>
    %c0_19 = arith.constant 0 : index
    %c0_20 = arith.constant 0 : index
    %25 = vector.load %arg8[%c0_19, %c0_20] : memref<1x1xf32, #tpu.memory_space<vmem>>, vector<1x1xf32>
    %26 = vector.broadcast %25 : vector<1x1xf32> to vector<1x128xf32>
    %27 = arith.addf %24, %26 : vector<1x128xf32>
    %28 = vector.shape_cast %27 : vector<1x128xf32> to vector<1x1x128xf32>
    %c0_21 = arith.constant 0 : index
    %c0_22 = arith.constant 0 : index
    %c0_23 = arith.constant 0 : index
    %29 = vector.load %arg9[%c0_21, %c0_22, %c0_23] : memref<1x1x128xf32, #tpu.memory_space<vmem>>, vector<1x1x128xf32>
    tpu.vector_store %arg9[%c0_21, %c0_22, %c0_23], %28 {strides = array<i32>} : memref<1x1x128xf32, #tpu.memory_space<vmem>>, vector<1x1x128xf32>,
    return
  }
  func.func @transform_0(%arg0: i32) -> (i32, i32) {
    %c0_i32 = arith.constant 0 : i32
    %c0_i32_0 = arith.constant 0 : i32
    return %c0_i32, %arg0 : i32, i32
  }
  func.func @transform_1(%arg0: i32) -> (i32, i32) {
    %c0_i32 = arith.constant 0 : i32
    %c0_i32_0 = arith.constant 0 : i32
    %c0_i32_1 = arith.constant 0 : i32
    return %c0_i32, %c0_i32_0 : i32, i32
  }
  func.func @transform_2(%arg0: i32) -> (i32, i32) {
    %c0_i32 = arith.constant 0 : i32
    %c0_i32_0 = arith.constant 0 : i32
    %c0_i32_1 = arith.constant 0 : i32
    return %c0_i32, %c0_i32_0 : i32, i32
  }
  func.func @transform_3(%arg0: i32) -> (i32, i32) {
    %c0_i32 = arith.constant 0 : i32
    %c0_i32_0 = arith.constant 0 : i32
    %c0_i32_1 = arith.constant 0 : i32
    return %c0_i32, %c0_i32_0 : i32, i32
  }
  func.func @transform_4(%arg0: i32) -> (i32, i32) {
    %c0_i32 = arith.constant 0 : i32
    %c0_i32_0 = arith.constant 0 : i32
    %c0_i32_1 = arith.constant 0 : i32
    return %c0_i32, %c0_i32_0 : i32, i32
  }
  func.func @transform_5(%arg0: i32) -> (i32, i32) {
    %c0_i32 = arith.constant 0 : i32
    %c0_i32_0 = arith.constant 0 : i32
    %c0_i32_1 = arith.constant 0 : i32
    return %c0_i32, %c0_i32_0 : i32, i32
  }
  func.func @transform_6(%arg0: i32) -> (i32, i32) {
    %c0_i32 = arith.constant 0 : i32
    %c0_i32_0 = arith.constant 0 : i32
    %c0_i32_1 = arith.constant 0 : i32
    return %c0_i32, %c0_i32_0 : i32, i32
  }
  func.func @transform_7(%arg0: i32) -> (i32, i32) {
    %c0_i32 = arith.constant 0 : i32
    %c0_i32_0 = arith.constant 0 : i32
    %c0_i32_1 = arith.constant 0 : i32
    return %c0_i32, %c0_i32_0 : i32, i32
  }
  func.func @transform_8(%arg0: i32) -> (i32, i32, i32) {
    %c0_i32 = arith.constant 0 : i32
    %c0_i32_0 = arith.constant 0 : i32
    %c0_i32_1 = arith.constant 0 : i32
    return %arg0, %c0_i32, %c0_i32_0 : i32, i32, i32
  }
}

</mosaic_0001>

<llo_original>
// kernel: tpu_custom_call.1
$region0: #{tpu_custom_call.1}
  #allocation0 [shape = 'u32[]', space=smem, size = 0x4, offset = 0x4, fixed_abs, tag = 'smem constant byte address 0x4 - core index']
  #allocation1 [shape = 'u32[144,128]{1,0:T(1,128)}', space=vmem, size = 0x12000, scoped, tag = 'internal scratch']
  #allocation2 [shape = 'f32[1,1]{1,0:T(1,128)S(1)}', space=vmem, size = 0x200, scoped, tag = 'scoped memory for tpu_custom_call.1']
  %s0 = inlined_call_operand.vmem [shape: bf16[24,128], index: 0, kind: input, shape index: {}]
  %s1 = inlined_call_operand.vmem [shape: bf16[128,16], index: 1, kind: input, shape index: {}]
  %s2 = inlined_call_operand.vmem [shape: bf16[128,128], index: 2, kind: input, shape index: {}]
  %s3 = inlined_call_operand.vmem [shape: bf16[128,8], index: 3, kind: input, shape index: {}]
  %s4 = inlined_call_operand.vmem [shape: f32[128,1], index: 4, kind: input, shape index: {}]
  %s5 = inlined_call_operand.vmem [shape: f32[128,1], index: 5, kind: input, shape index: {}]
  %s6 = inlined_call_operand.vmem [shape: f32[128,1], index: 6, kind: input, shape index: {}]
  %s7 = inlined_call_operand.<no memory space> [shape: f32[1,1], index: 7, kind: input, shape index: {}]
  %s8 = inlined_call_operand.hbm [shape: f32[1,1,128], index: 8, kind: output, shape index: {}]
  %s9 = sld [smem:[#allocation0]]
  $region42: #{tpu_custom_call.1} parent=0
    _
  %s11 = ssub.s32 1, %s9
  %s12 = scalar_select 0, %s11, %s9
  %v13 = vstv %s7
  %14 = vst [vmem:[#allocation2] sm:$0x1] %v13
  $region1: #{tpu_custom_call.1} parent=0
    #allocation3 [shape = 'u8[512]{0}', space=vmem, size = 0x400, scoped, tag = 'output window, operand 0, single buffered']
    #allocation4 [shape = 's32[1]{0}', space=sflag, size = 0x4, scoped, tag = 'scoped memory for tpu_custom_call.1']
    %15 = vsyncpa [#allocation4], 0
    // Predicated region
    $region2: #{tpu_custom_call.1} parent=1 // pred_check
      _
    $region3: #{tpu_custom_call.1} parent=1 // pred_check_branch
      %17 = sbr.rel (0) target = $region5
    $region4: #{tpu_custom_call.1} parent=1 // pred_region
      _
    $region5: #{tpu_custom_call.1} parent=1 // pred_fallthru
      _
    // Predicated region
    $region6: #{tpu_custom_call.1} parent=1 // pred_check
      _
    $region7: #{tpu_custom_call.1} parent=1 // pred_check_branch
      %19 = sbr.rel (0) target = $region9
    $region8: #{tpu_custom_call.1} parent=1 // pred_region
      _
    $region9: #{tpu_custom_call.1} parent=1 // pred_fallthru
      _
    // Predicated region
    $region10: #{tpu_custom_call.1} parent=1 // pred_check
      _
    $region11: #{tpu_custom_call.1} parent=1 // pred_check_branch
      %21 = sbr.rel (0) target = $region13
    $region12: #{tpu_custom_call.1} parent=1 // pred_region
      _
    $region13: #{tpu_custom_call.1} parent=1 // pred_fallthru
      _
    // Predicated region
    $region14: #{tpu_custom_call.1} parent=1 // pred_check
      _
    $region15: #{tpu_custom_call.1} parent=1 // pred_check_branch
      %23 = sbr.rel (0) target = $region17
    $region16: #{tpu_custom_call.1} parent=1 // pred_region
      _
    $region17: #{tpu_custom_call.1} parent=1 // pred_fallthru
      _
    // Predicated region
    $region18: #{tpu_custom_call.1} parent=1 // pred_check
      _
    $region19: #{tpu_custom_call.1} parent=1 // pred_check_branch
      %25 = sbr.rel (0) target = $region21
    $region20: #{tpu_custom_call.1} parent=1 // pred_region
      _
    $region21: #{tpu_custom_call.1} parent=1 // pred_fallthru
      _
    // Predicated region
    $region22: #{tpu_custom_call.1} parent=1 // pred_check
      _
    $region23: #{tpu_custom_call.1} parent=1 // pred_check_branch
      %27 = sbr.rel (0) target = $region25
    $region24: #{tpu_custom_call.1} parent=1 // pred_region
      _
    $region25: #{tpu_custom_call.1} parent=1 // pred_fallthru
      _
    // Predicated region
    $region26: #{tpu_custom_call.1} parent=1 // pred_check
      _
    $region27: #{tpu_custom_call.1} parent=1 // pred_check_branch
      %29 = sbr.rel (0) target = $region29
    $region28: #{tpu_custom_call.1} parent=1 // pred_region
      _
    $region29: #{tpu_custom_call.1} parent=1 // pred_fallthru
      _
    // Predicated region
    $region30: #{tpu_custom_call.1} parent=1 // pred_check
      _
    $region31: #{tpu_custom_call.1} parent=1 // pred_check_branch
      %31 = sbr.rel (0) target = $region33
    $region32: #{tpu_custom_call.1} parent=1 // pred_region
      _
    $region33: #{tpu_custom_call.1} parent=1 // pred_fallthru
      _
    %v33 = vld [vmem:[%s0] sm:$0xf]
    %v34 = vld [vmem:[%s0 + $0x4] sm:$0xf]
    %v35 = vld [vmem:[%s0 + $0x8] sm:$0xf]
    %v36 = vld [vmem:[%s1] sm:$0xf]
    %v37 = vld [vmem:[%s1 + $0x4] sm:$0xf]
    %v38 = vld [vmem:[%s1 + $0x8] sm:$0xf]
    %v39 = vld [vmem:[%s1 + $0xc] sm:$0xf]
    %v40 = vld [vmem:[%s1 + $0x10] sm:$0xf]
    %v41 = vld [vmem:[%s1 + $0x14] sm:$0xf]
    %v42 = vld [vmem:[%s1 + $0x18] sm:$0xf]
    %v43 = vld [vmem:[%s1 + $0x1c] sm:$0xf]
    %v44 = vld [vmem:[%s1 + $0x20] sm:$0xf]
    %v45 = vld [vmem:[%s1 + $0x24] sm:$0xf]
    %v46 = vld [vmem:[%s1 + $0x28] sm:$0xf]
    %v47 = vld [vmem:[%s1 + $0x2c] sm:$0xf]
    %v48 = vld [vmem:[%s1 + $0x30] sm:$0xf]
    %v49 = vld [vmem:[%s1 + $0x34] sm:$0xf]
    %v50 = vld [vmem:[%s1 + $0x38] sm:$0xf]
    %v51 = vld [vmem:[%s1 + $0x3c] sm:$0xf]
    %v52 = vld [vmem:[%s5] sm:$0xff]
    %v53 = vld [vmem:[%s5 + $0x8] sm:$0xff]
    %v54 = vld [vmem:[%s5 + $0x10] sm:$0xff]
    %v55 = vld [vmem:[%s5 + $0x18] sm:$0xff]
    %v56 = vld [vmem:[%s5 + $0x20] sm:$0xff]
    %v57 = vld [vmem:[%s5 + $0x28] sm:$0xff]
    %v58 = vld [vmem:[%s5 + $0x30] sm:$0xff]
    %v59 = vld [vmem:[%s5 + $0x38] sm:$0xff]
    %v60 = vld [vmem:[%s5 + $0x40] sm:$0xff]
    %v61 = vld [vmem:[%s5 + $0x48] sm:$0xff]
    %v62 = vld [vmem:[%s5 + $0x50] sm:$0xff]
    %v63 = vld [vmem:[%s5 + $0x58] sm:$0xff]
    %v64 = vld [vmem:[%s5 + $0x60] sm:$0xff]
    %v65 = vld [vmem:[%s5 + $0x68] sm:$0xff]
    %v66 = vld [vmem:[%s5 + $0x70] sm:$0xff]
    %v67 = vld [vmem:[%s5 + $0x78] sm:$0xff]
    %69 = vset.pattern.permute.xlu0 0
    %70 = vperm.xlu0 %69, %v52
    %v71 = vpop.permute.xlu0 %70
    %74 = vset.pattern.permute.xlu0 0
    %75 = vperm.xlu0 %74, %v53
    %v76 = vpop.permute.xlu0 %75
    %79 = vset.pattern.permute.xlu0 0
    %80 = vperm.xlu0 %79, %v54
    %v81 = vpop.permute.xlu0 %80
    %84 = vset.pattern.permute.xlu0 0
    %85 = vperm.xlu0 %84, %v55
    %v86 = vpop.permute.xlu0 %85
    %89 = vset.pattern.permute.xlu0 0
    %90 = vperm.xlu0 %89, %v56
    %v91 = vpop.permute.xlu0 %90
    %94 = vset.pattern.permute.xlu0 0
    %95 = vperm.xlu0 %94, %v57
    %v96 = vpop.permute.xlu0 %95
    %99 = vset.pattern.permute.xlu0 0
    %100 = vperm.xlu0 %99, %v58
    %v101 = vpop.permute.xlu0 %100
    %104 = vset.pattern.permute.xlu0 0
    %105 = vperm.xlu0 %104, %v59
    %v106 = vpop.permute.xlu0 %105
    %109 = vset.pattern.permute.xlu0 0
    %110 = vperm.xlu0 %109, %v60
    %v111 = vpop.permute.xlu0 %110
    %114 = vset.pattern.permute.xlu0 0
    %115 = vperm.xlu0 %114, %v61
    %v116 = vpop.permute.xlu0 %115
    %119 = vset.pattern.permute.xlu0 0
    %120 = vperm.xlu0 %119, %v62
    %v121 = vpop.permute.xlu0 %120
    %124 = vset.pattern.permute.xlu0 0
    %125 = vperm.xlu0 %124, %v63
    %v126 = vpop.permute.xlu0 %125
    %129 = vset.pattern.permute.xlu0 0
    %130 = vperm.xlu0 %129, %v64
    %v131 = vpop.permute.xlu0 %130
    %134 = vset.pattern.permute.xlu0 0
    %135 = vperm.xlu0 %134, %v65
    %v136 = vpop.permute.xlu0 %135
    %139 = vset.pattern.permute.xlu0 0
    %140 = vperm.xlu0 %139, %v66
    %v141 = vpop.permute.xlu0 %140
    %144 = vset.pattern.permute.xlu0 0
    %145 = vperm.xlu0 %144, %v67
    %v146 = vpop.permute.xlu0 %145
    %v164 = vunpack.c.l.b16 %v36
    %v165 = vunpack.c.l.b16 %v37
    %v166 = vunpack.c.l.b16 %v38
    %v167 = vunpack.c.l.b16 %v39
    %v168 = vunpack.c.l.b16 %v40
    %v169 = vunpack.c.l.b16 %v41
    %v170 = vunpack.c.l.b16 %v42
    %v171 = vunpack.c.l.b16 %v43
    %v172 = vunpack.c.l.b16 %v44
    %v173 = vunpack.c.l.b16 %v45
    %v174 = vunpack.c.l.b16 %v46
    %v175 = vunpack.c.l.b16 %v47
    %v176 = vunpack.c.l.b16 %v48
    %v177 = vunpack.c.l.b16 %v49
    %v178 = vunpack.c.l.b16 %v50
    %v179 = vunpack.c.l.b16 %v51
    %v180 = vpack.c.b16 %v165, %v164
    %v181 = vpack.c.b16 %v167, %v166
    %v182 = vpack.c.b16 %v169, %v168
    %v183 = vpack.c.b16 %v171, %v170
    %v184 = vpack.c.b16 %v173, %v172
    %v185 = vpack.c.b16 %v175, %v174
    %v186 = vpack.c.b16 %v177, %v176
    %v187 = vpack.c.b16 %v179, %v178
    %v190 = vunpack.c.l.b16 %v33
    %v191 = vunpack.c.l.b16 %v34
    %v192 = vpack.c.b16 %v191, %v190
    %vm194 = vcmask 130048
    %v196 = vsel %vm194, %v180, 0
    %v199 = vsel %vm194, %v181, 0
    %v202 = vsel %vm194, %v182, 0
    %v205 = vsel %vm194, %v183, 0
    %v208 = vsel %vm194, %v184, 0
    %v211 = vsel %vm194, %v185, 0
    %v214 = vsel %vm194, %v186, 0
    %v217 = vsel %vm194, %v187, 0
    %219 = vmatprep.subr.bf16.mxu0 0
    %220 = vmatpush1.bf16.msra.mxu0 0
    %221 = vmatprep.subr.bf16.mxu0 0
    %222 = vmatpush1.bf16.msra.mxu0 0
    %223 = vmatprep.subr.bf16.mxu0 0
    %224 = vmatpush1.bf16.msra.mxu0 0
    %225 = vmatprep.subr.bf16.mxu0 0
    %226 = vmatpush1.bf16.msra.mxu0 0
    %227 = vmatprep.subr.bf16.mxu0 0
    %228 = vmatpush1.bf16.msra.mxu0 0
    %229 = vmatprep.subr.bf16.mxu0 0
    %230 = vmatpush1.bf16.msra.mxu0 0
    %231 = vmatprep.subr.bf16.mxu0 0
    %232 = vmatpush1.bf16.msra.mxu0 0
    %233 = vmatprep.subr.bf16.mxu0 0
    %234 = vmatpush1.bf16.msra.mxu0 %v192
    %235 = vmatprep.subr.bf16.mxu0 0
    %236 = vmatpush2.bf16.msra.mxu0 0
    %237 = vmatprep.subr.bf16.mxu0 0
    %238 = vmatpush2.bf16.msra.mxu0 0
    %239 = vmatprep.subr.bf16.mxu0 0
    %240 = vmatpush2.bf16.msra.mxu0 0
    %241 = vmatprep.subr.bf16.mxu0 0
    %242 = vmatpush2.bf16.msra.mxu0 0
    %243 = vmatprep.subr.bf16.mxu0 0
    %244 = vmatpush2.bf16.msra.mxu0 0
    %245 = vmatprep.subr.bf16.mxu0 0
    %246 = vmatpush2.bf16.msra.mxu0 0
    %247 = vmatprep.subr.bf16.mxu0 0
    %248 = vmatpush2.bf16.msra.mxu0 0
    %249 = vmatprep.subr.bf16.mxu0 0
    %250 = vmatpush2.bf16.msra.mxu0 0
    %251 = vmatprep.mubr.bf16.mxu0 0
    %252 = vmatmul.mubr.bf16.gmra.mxu0 %v196
    %v253 = vpop.f32.mrf.mxu0
    %v254 = vadd.f32 %v71, %v253
    %v255 = vpop.f32.mrf.mxu0
    %v256 = vpop.f32.mrf.mxu0
    %v257 = vadd.f32 %v76, %v256
    %v258 = vpop.f32.mrf.mxu0
    %259 = vmatprep.mubr.bf16.mxu0 0
    %260 = vmatmul.mubr.bf16.gmra.mxu0 %v199
    %v261 = vpop.f32.mrf.mxu0
    %v262 = vadd.f32 %v81, %v261
    %v263 = vpop.f32.mrf.mxu0
    %v264 = vpop.f32.mrf.mxu0
    %v265 = vadd.f32 %v86, %v264
    %v266 = vpop.f32.mrf.mxu0
    %267 = vmatprep.mubr.bf16.mxu0 0
    %268 = vmatmul.mubr.bf16.gmra.mxu0 %v202
    %v269 = vpop.f32.mrf.mxu0
    %v270 = vadd.f32 %v91, %v269
    %v271 = vpop.f32.mrf.mxu0
    %v272 = vpop.f32.mrf.mxu0
    %v273 = vadd.f32 %v96, %v272
    %v274 = vpop.f32.mrf.mxu0
    %275 = vmatprep.mubr.bf16.mxu0 0
    %276 = vmatmul.mubr.bf16.gmra.mxu0 %v205
    %v277 = vpop.f32.mrf.mxu0
    %v278 = vadd.f32 %v101, %v277
    %v279 = vpop.f32.mrf.mxu0
    %v280 = vpop.f32.mrf.mxu0
    %v281 = vadd.f32 %v106, %v280
    %v282 = vpop.f32.mrf.mxu0
    %283 = vmatprep.mubr.bf16.mxu0 0
    %284 = vmatmul.mubr.bf16.gmra.mxu0 %v208
    %v285 = vpop.f32.mrf.mxu0
    %v286 = vadd.f32 %v111, %v285
    %v287 = vpop.f32.mrf.mxu0
    %v288 = vpop.f32.mrf.mxu0
    %v289 = vadd.f32 %v116, %v288
    %v290 = vpop.f32.mrf.mxu0
    %291 = vmatprep.mubr.bf16.mxu0 0
    %292 = vmatmul.mubr.bf16.gmra.mxu0 %v211
    %v293 = vpop.f32.mrf.mxu0
    %v294 = vadd.f32 %v121, %v293
    %v295 = vpop.f32.mrf.mxu0
    %v296 = vpop.f32.mrf.mxu0
    %v297 = vadd.f32 %v126, %v296
    %v298 = vpop.f32.mrf.mxu0
    %299 = vmatprep.mubr.bf16.mxu0 0
    %300 = vmatmul.mubr.bf16.gmra.mxu0 %v214
    %v301 = vpop.f32.mrf.mxu0
    %v302 = vadd.f32 %v131, %v301
    %v303 = vpop.f32.mrf.mxu0
    %v304 = vpop.f32.mrf.mxu0
    %v305 = vadd.f32 %v136, %v304
    %v306 = vpop.f32.mrf.mxu0
    %307 = vmatprep.mubr.bf16.mxu0 0
    %308 = vmatmul.mubr.bf16.gmra.mxu0 %v217
    %v309 = vpop.f32.mrf.mxu0
    %v310 = vadd.f32 %v141, %v309
    %v311 = vpop.f32.mrf.mxu0
    %v312 = vpop.f32.mrf.mxu0
    %v313 = vadd.f32 %v146, %v312
    %v314 = vpop.f32.mrf.mxu0
    %315 = vdwg.mxu0
    %v316 = vmax.f32 %v254, 0.0
    %v317 = vmax.f32 %v257, 0.0
    %v318 = vmax.f32 %v262, 0.0
    %v319 = vmax.f32 %v265, 0.0
    %v320 = vmax.f32 %v270, 0.0
    %v321 = vmax.f32 %v273, 0.0
    %v322 = vmax.f32 %v278, 0.0
    %v323 = vmax.f32 %v281, 0.0
    %v324 = vmax.f32 %v286, 0.0
    %v325 = vmax.f32 %v289, 0.0
    %v326 = vmax.f32 %v294, 0.0
    %v327 = vmax.f32 %v297, 0.0
    %v328 = vmax.f32 %v302, 0.0
    %v329 = vmax.f32 %v305, 0.0
    %v330 = vmax.f32 %v310, 0.0
    %v331 = vmax.f32 %v313, 0.0
    %v332 = vld [vmem:[%s2] sm:$0xf]
    %v333 = vld [vmem:[%s2 + $0x4] sm:$0xf]
    %v334 = vld [vmem:[%s2 + $0x8] sm:$0xf]
    %v335 = vld [vmem:[%s2 + $0xc] sm:$0xf]
    %v336 = vld [vmem:[%s2 + $0x10] sm:$0xf]
    %v337 = vld [vmem:[%s2 + $0x14] sm:$0xf]
    %v338 = vld [vmem:[%s2 + $0x18] sm:$0xf]
    %v339 = vld [vmem:[%s2 + $0x1c] sm:$0xf]
    %v340 = vld [vmem:[%s2 + $0x20] sm:$0xf]
    %v341 = vld [vmem:[%s2 + $0x24] sm:$0xf]
    %v342 = vld [vmem:[%s2 + $0x28] sm:$0xf]
    %v343 = vld [vmem:[%s2 + $0x2c] sm:$0xf]
    %v344 = vld [vmem:[%s2 + $0x30] sm:$0xf]
    %v345 = vld [vmem:[%s2 + $0x34] sm:$0xf]
    %v346 = vld [vmem:[%s2 + $0x38] sm:$0xf]
    %v347 = vld [vmem:[%s2 + $0x3c] sm:$0xf]
    %v348 = vpack.c.bf16 %v317, %v316
    %v349 = vpack.c.bf16 %v319, %v318
    %v350 = vpack.c.bf16 %v321, %v320
    %v351 = vpack.c.bf16 %v323, %v322
    %v352 = vpack.c.bf16 %v325, %v324
    %v353 = vpack.c.bf16 %v327, %v326
    %v354 = vpack.c.bf16 %v329, %v328
    %v355 = vpack.c.bf16 %v331, %v330
    %v356 = vld [vmem:[%s3] sm:$0xf]
    %v357 = vld [vmem:[%s3 + $0x4] sm:$0xf]
    %v358 = vld [vmem:[%s3 + $0x8] sm:$0xf]
    %v359 = vld [vmem:[%s3 + $0xc] sm:$0xf]
    %v360 = vld [vmem:[%s3 + $0x10] sm:$0xf]
    %v361 = vld [vmem:[%s3 + $0x14] sm:$0xf]
    %v362 = vld [vmem:[%s3 + $0x18] sm:$0xf]
    %v363 = vld [vmem:[%s3 + $0x1c] sm:$0xf]
    %v364 = vld [vmem:[%s3 + $0x20] sm:$0xf]
    %v365 = vld [vmem:[%s3 + $0x24] sm:$0xf]
    %v366 = vld [vmem:[%s3 + $0x28] sm:$0xf]
    %v367 = vld [vmem:[%s3 + $0x2c] sm:$0xf]
    %v368 = vld [vmem:[%s3 + $0x30] sm:$0xf]
    %v369 = vld [vmem:[%s3 + $0x34] sm:$0xf]
    %v370 = vld [vmem:[%s3 + $0x38] sm:$0xf]
    %v371 = vld [vmem:[%s3 + $0x3c] sm:$0xf]
    %v388 = vunpack.c.l.b16 %v356
    %v389 = vunpack.c.l.b16 %v357
    %v390 = vunpack.c.l.b16 %v358
    %v391 = vunpack.c.l.b16 %v359
    %v392 = vunpack.c.l.b16 %v360
    %v393 = vunpack.c.l.b16 %v361
    %v394 = vunpack.c.l.b16 %v362
    %v395 = vunpack.c.l.b16 %v363
    %v396 = vunpack.c.l.b16 %v364
    %v397 = vunpack.c.l.b16 %v365
    %v398 = vunpack.c.l.b16 %v366
    %v399 = vunpack.c.l.b16 %v367
    %v400 = vunpack.c.l.b16 %v368
    %v401 = vunpack.c.l.b16 %v369
    %v402 = vunpack.c.l.b16 %v370
    %v403 = vunpack.c.l.b16 %v371
    %v404 = vpack.c.b16 %v389, %v388
    %v405 = vpack.c.b16 %v391, %v390
    %v406 = vpack.c.b16 %v393, %v392
    %v407 = vpack.c.b16 %v395, %v394
    %v408 = vpack.c.b16 %v397, %v396
    %v409 = vpack.c.b16 %v399, %v398
    %v410 = vpack.c.b16 %v401, %v400
    %v411 = vpack.c.b16 %v403, %v402
    %vm412 = vcmask 64512
    %v414 = vsel %vm412, %v404, 0
    %v417 = vsel %vm412, %v405, 0
    %v420 = vsel %vm412, %v406, 0
    %v423 = vsel %vm412, %v407, 0
    %v426 = vsel %vm412, %v408, 0
    %v429 = vsel %vm412, %v409, 0
    %v432 = vsel %vm412, %v410, 0
    %v435 = vsel %vm412, %v411, 0
    %vm437 = vcmask 1043456
    %v439 = vsel %vm437, %v35, 0
    %441 = vmatprep.subr.bf16.mxu0 0
    %442 = vmatpush1.bf16.msra.mxu0 0
    %443 = vmatprep.subr.bf16.mxu0 0
    %444 = vmatpush1.bf16.msra.mxu0 0
    %445 = vmatprep.subr.bf16.mxu0 0
    %446 = vmatpush1.bf16.msra.mxu0 0
    %447 = vmatprep.subr.bf16.mxu0 0
    %448 = vmatpush1.bf16.msra.mxu0 0
    %449 = vmatprep.subr.bf16.mxu0 0
    %450 = vmatpush1.bf16.msra.mxu0 0
    %451 = vmatprep.subr.bf16.mxu0 0
    %452 = vmatpush1.bf16.msra.mxu0 0
    %453 = vmatprep.subr.bf16.mxu0 0
    %454 = vmatpush1.bf16.msra.mxu0 0
    %455 = vmatprep.subr.bf16.mxu0 0
    %456 = vmatpush1.bf16.msra.mxu0 %v439
    %457 = vmatprep.subr.bf16.mxu0 0
    %458 = vmatpush2.bf16.msra.mxu0 0
    %459 = vmatprep.subr.bf16.mxu0 0
    %460 = vmatpush2.bf16.msra.mxu0 0
    %461 = vmatprep.subr.bf16.mxu0 0
    %462 = vmatpush2.bf16.msra.mxu0 0
    %463 = vmatprep.subr.bf16.mxu0 0
    %464 = vmatpush2.bf16.msra.mxu0 0
    %465 = vmatprep.subr.bf16.mxu0 0
    %466 = vmatpush2.bf16.msra.mxu0 0
    %467 = vmatprep.subr.bf16.mxu0 0
    %468 = vmatpush2.bf16.msra.mxu0 0
    %469 = vmatprep.subr.bf16.mxu0 0
    %470 = vmatpush2.bf16.msra.mxu0 0
    %471 = vmatprep.subr.bf16.mxu0 0
    %472 = vmatpush2.bf16.msra.mxu0 0
    %473 = vmatprep.mubr.bf16.mxu0 0
    %474 = vmatmul.mubr.bf16.gmra.mxu0 %v414
    %v475 = vpop.f32.mrf.mxu0
    %v476 = vadd.f32 0.0, %v475
    %v477 = vpop.f32.mrf.mxu0
    %v478 = vpop.f32.mrf.mxu0
    %v479 = vadd.f32 0.0, %v478
    %v480 = vpop.f32.mrf.mxu0
    %481 = vmatprep.mubr.bf16.mxu0 0
    %482 = vmatmul.mubr.bf16.gmra.mxu0 %v417
    %v483 = vpop.f32.mrf.mxu0
    %v484 = vadd.f32 0.0, %v483
    %v485 = vpop.f32.mrf.mxu0
    %v486 = vpop.f32.mrf.mxu0
    %v487 = vadd.f32 0.0, %v486
    %v488 = vpop.f32.mrf.mxu0
    %489 = vmatprep.mubr.bf16.mxu0 0
    %490 = vmatmul.mubr.bf16.gmra.mxu0 %v420
    %v491 = vpop.f32.mrf.mxu0
    %v492 = vadd.f32 0.0, %v491
    %v493 = vpop.f32.mrf.mxu0
    %v494 = vpop.f32.mrf.mxu0
    %v495 = vadd.f32 0.0, %v494
    %v496 = vpop.f32.mrf.mxu0
    %497 = vmatprep.mubr.bf16.mxu0 0
    %498 = vmatmul.mubr.bf16.gmra.mxu0 %v423
    %v499 = vpop.f32.mrf.mxu0
    %v500 = vadd.f32 0.0, %v499
    %v501 = vpop.f32.mrf.mxu0
    %v502 = vpop.f32.mrf.mxu0
    %v503 = vadd.f32 0.0, %v502
    %v504 = vpop.f32.mrf.mxu0
    %505 = vmatprep.mubr.bf16.mxu0 0
    %506 = vmatmul.mubr.bf16.gmra.mxu0 %v426
    %v507 = vpop.f32.mrf.mxu0
    %v508 = vadd.f32 0.0, %v507
    %v509 = vpop.f32.mrf.mxu0
    %v510 = vpop.f32.mrf.mxu0
    %v511 = vadd.f32 0.0, %v510
    %v512 = vpop.f32.mrf.mxu0
    %513 = vmatprep.mubr.bf16.mxu0 0
    %514 = vmatmul.mubr.bf16.gmra.mxu0 %v429
    %v515 = vpop.f32.mrf.mxu0
    %v516 = vadd.f32 0.0, %v515
    %v517 = vpop.f32.mrf.mxu0
    %v518 = vpop.f32.mrf.mxu0
    %v519 = vadd.f32 0.0, %v518
    %v520 = vpop.f32.mrf.mxu0
    %521 = vmatprep.mubr.bf16.mxu0 0
    %522 = vmatmul.mubr.bf16.gmra.mxu0 %v432
    %v523 = vpop.f32.mrf.mxu0
    %v524 = vadd.f32 0.0, %v523
    %v525 = vpop.f32.mrf.mxu0
    %v526 = vpop.f32.mrf.mxu0
    %v527 = vadd.f32 0.0, %v526
    %v528 = vpop.f32.mrf.mxu0
    %529 = vmatprep.mubr.bf16.mxu0 0
    %530 = vmatmul.mubr.bf16.gmra.mxu0 %v435
    %v531 = vpop.f32.mrf.mxu0
    %v532 = vadd.f32 0.0, %v531
    %v533 = vpop.f32.mrf.mxu0
    %v534 = vpop.f32.mrf.mxu0
    %v535 = vadd.f32 0.0, %v534
    %v536 = vpop.f32.mrf.mxu0
    %537 = vdwg.mxu0
    %v554 = vunpack.c.l.b16 %v332
    %v555 = vunpack.c.l.b16 %v333
    %v556 = vunpack.c.l.b16 %v334
    %v557 = vunpack.c.l.b16 %v335
    %v558 = vunpack.c.l.b16 %v336
    %v559 = vunpack.c.l.b16 %v337
    %v560 = vunpack.c.l.b16 %v338
    %v561 = vunpack.c.l.b16 %v339
    %v562 = vunpack.c.l.b16 %v340
    %v563 = vunpack.c.l.b16 %v341
    %v564 = vunpack.c.l.b16 %v342
    %v565 = vunpack.c.l.b16 %v343
    %v566 = vunpack.c.l.b16 %v344
    %v567 = vunpack.c.l.b16 %v345
    %v568 = vunpack.c.l.b16 %v346
    %v569 = vunpack.c.l.b16 %v347
    %v570 = vpack.c.b16 %v555, %v554
    %v571 = vpack.c.b16 %v557, %v556
    %v572 = vpack.c.b16 %v559, %v558
    %v573 = vpack.c.b16 %v561, %v560
    %v574 = vpack.c.b16 %v563, %v562
    %v575 = vpack.c.b16 %v565, %v564
    %v576 = vpack.c.b16 %v567, %v566
    %v577 = vpack.c.b16 %v569, %v568
    %586 = vmatprep.subr.bf16.mxu0 0
    %587 = vmatpush1.bf16.msra.mxu0 %v355
    %588 = vmatprep.subr.bf16.mxu0 0
    %589 = vmatpush1.bf16.msra.mxu0 %v354
    %590 = vmatprep.subr.bf16.mxu0 0
    %591 = vmatpush1.bf16.msra.mxu0 %v353
    %592 = vmatprep.subr.bf16.mxu0 0
    %593 = vmatpush1.bf16.msra.mxu0 %v352
    %594 = vmatprep.subr.bf16.mxu0 0
    %595 = vmatpush1.bf16.msra.mxu0 %v351
    %596 = vmatprep.subr.bf16.mxu0 0
    %597 = vmatpush1.bf16.msra.mxu0 %v350
    %598 = vmatprep.subr.bf16.mxu0 0
    %599 = vmatpush1.bf16.msra.mxu0 %v349
    %600 = vmatprep.subr.bf16.mxu0 0
    %601 = vmatpush1.bf16.msra.mxu0 %v348
    %602 = vmatprep.subr.bf16.mxu0 0
    %603 = vmatpush2.bf16.msra.mxu0 0
    %604 = vmatprep.subr.bf16.mxu0 0
    %605 = vmatpush2.bf16.msra.mxu0 0
    %606 = vmatprep.subr.bf16.mxu0 0
    %607 = vmatpush2.bf16.msra.mxu0 0
    %608 = vmatprep.subr.bf16.mxu0 0
    %609 = vmatpush2.bf16.msra.mxu0 0
    %610 = vmatprep.subr.bf16.mxu0 0
    %611 = vmatpush2.bf16.msra.mxu0 0
    %612 = vmatprep.subr.bf16.mxu0 0
    %613 = vmatpush2.bf16.msra.mxu0 0
    %614 = vmatprep.subr.bf16.mxu0 0
    %615 = vmatpush2.bf16.msra.mxu0 0
    %616 = vmatprep.subr.bf16.mxu0 0
    %617 = vmatpush2.bf16.msra.mxu0 0
    %618 = vmatprep.mubr.bf16.mxu0 0
    %619 = vmatmul.mubr.bf16.gmra.mxu0 %v570
    %v620 = vpop.f32.mrf.mxu0
    %v621 = vadd.f32 %v476, %v620
    %v622 = vpop.f32.mrf.mxu0
    %v623 = vpop.f32.mrf.mxu0
    %v624 = vadd.f32 %v479, %v623
    %v625 = vpop.f32.mrf.mxu0
    %626 = vmatprep.mubr.bf16.mxu0 0
    %627 = vmatmul.mubr.bf16.gmra.mxu0 %v571
    %v628 = vpop.f32.mrf.mxu0
    %v629 = vadd.f32 %v484, %v628
    %v630 = vpop.f32.mrf.mxu0
    %v631 = vpop.f32.mrf.mxu0
    %v632 = vadd.f32 %v487, %v631
    %v633 = vpop.f32.mrf.mxu0
    %634 = vmatprep.mubr.bf16.mxu0 0
    %635 = vmatmul.mubr.bf16.gmra.mxu0 %v572
    %v636 = vpop.f32.mrf.mxu0
    %v637 = vadd.f32 %v492, %v636
    %v638 = vpop.f32.mrf.mxu0
    %v639 = vpop.f32.mrf.mxu0
    %v640 = vadd.f32 %v495, %v639
    %v641 = vpop.f32.mrf.mxu0
    %642 = vmatprep.mubr.bf16.mxu0 0
    %643 = vmatmul.mubr.bf16.gmra.mxu0 %v573
    %v644 = vpop.f32.mrf.mxu0
    %v645 = vadd.f32 %v500, %v644
    %v646 = vpop.f32.mrf.mxu0
    %v647 = vpop.f32.mrf.mxu0
    %v648 = vadd.f32 %v503, %v647
    %v649 = vpop.f32.mrf.mxu0
    %650 = vmatprep.mubr.bf16.mxu0 0
    %651 = vmatmul.mubr.bf16.gmra.mxu0 %v574
    %v652 = vpop.f32.mrf.mxu0
    %v653 = vadd.f32 %v508, %v652
    %v654 = vpop.f32.mrf.mxu0
    %v655 = vpop.f32.mrf.mxu0
    %v656 = vadd.f32 %v511, %v655
    %v657 = vpop.f32.mrf.mxu0
    %658 = vmatprep.mubr.bf16.mxu0 0
    %659 = vmatmul.mubr.bf16.gmra.mxu0 %v575
    %v660 = vpop.f32.mrf.mxu0
    %v661 = vadd.f32 %v516, %v660
    %v662 = vpop.f32.mrf.mxu0
    %v663 = vpop.f32.mrf.mxu0
    %v664 = vadd.f32 %v519, %v663
    %v665 = vpop.f32.mrf.mxu0
    %666 = vmatprep.mubr.bf16.mxu0 0
    %667 = vmatmul.mubr.bf16.gmra.mxu0 %v576
    %v668 = vpop.f32.mrf.mxu0
    %v669 = vadd.f32 %v524, %v668
    %v670 = vpop.f32.mrf.mxu0
    %v671 = vpop.f32.mrf.mxu0
    %v672 = vadd.f32 %v527, %v671
    %v673 = vpop.f32.mrf.mxu0
    %674 = vmatprep.mubr.bf16.mxu0 0
    %675 = vmatmul.mubr.bf16.gmra.mxu0 %v577
    %v676 = vpop.f32.mrf.mxu0
    %v677 = vadd.f32 %v532, %v676
    %v678 = vpop.f32.mrf.mxu0
    %v679 = vpop.f32.mrf.mxu0
    %v680 = vadd.f32 %v535, %v679
    %v681 = vpop.f32.mrf.mxu0
    %682 = vdwg.mxu0
    %v683 = vld [vmem:[%s6] sm:$0xff]
    %v684 = vld [vmem:[%s6 + $0x8] sm:$0xff]
    %v685 = vld [vmem:[%s6 + $0x10] sm:$0xff]
    %v686 = vld [vmem:[%s6 + $0x18] sm:$0xff]
    %v687 = vld [vmem:[%s6 + $0x20] sm:$0xff]
    %v688 = vld [vmem:[%s6 + $0x28] sm:$0xff]
    %v689 = vld [vmem:[%s6 + $0x30] sm:$0xff]
    %v690 = vld [vmem:[%s6 + $0x38] sm:$0xff]
    %v691 = vld [vmem:[%s6 + $0x40] sm:$0xff]
    %v692 = vld [vmem:[%s6 + $0x48] sm:$0xff]
    %v693 = vld [vmem:[%s6 + $0x50] sm:$0xff]
    %v694 = vld [vmem:[%s6 + $0x58] sm:$0xff]
    %v695 = vld [vmem:[%s6 + $0x60] sm:$0xff]
    %v696 = vld [vmem:[%s6 + $0x68] sm:$0xff]
    %v697 = vld [vmem:[%s6 + $0x70] sm:$0xff]
    %v698 = vld [vmem:[%s6 + $0x78] sm:$0xff]
    %700 = vset.pattern.permute.xlu0 0
    %701 = vperm.xlu0 %700, %v683
    %v702 = vpop.permute.xlu0 %701
    %705 = vset.pattern.permute.xlu0 0
    %706 = vperm.xlu0 %705, %v684
    %v707 = vpop.permute.xlu0 %706
    %710 = vset.pattern.permute.xlu0 0
    %711 = vperm.xlu0 %710, %v685
    %v712 = vpop.permute.xlu0 %711
    %715 = vset.pattern.permute.xlu0 0
    %716 = vperm.xlu0 %715, %v686
    %v717 = vpop.permute.xlu0 %716
    %720 = vset.pattern.permute.xlu0 0
    %721 = vperm.xlu0 %720, %v687
    %v722 = vpop.permute.xlu0 %721
    %725 = vset.pattern.permute.xlu0 0
    %726 = vperm.xlu0 %725, %v688
    %v727 = vpop.permute.xlu0 %726
    %730 = vset.pattern.permute.xlu0 0
    %731 = vperm.xlu0 %730, %v689
    %v732 = vpop.permute.xlu0 %731
    %735 = vset.pattern.permute.xlu0 0
    %736 = vperm.xlu0 %735, %v690
    %v737 = vpop.permute.xlu0 %736
    %740 = vset.pattern.permute.xlu0 0
    %741 = vperm.xlu0 %740, %v691
    %v742 = vpop.permute.xlu0 %741
    %745 = vset.pattern.permute.xlu0 0
    %746 = vperm.xlu0 %745, %v692
    %v747 = vpop.permute.xlu0 %746
    %750 = vset.pattern.permute.xlu0 0
    %751 = vperm.xlu0 %750, %v693
    %v752 = vpop.permute.xlu0 %751
    %755 = vset.pattern.permute.xlu0 0
    %756 = vperm.xlu0 %755, %v694
    %v757 = vpop.permute.xlu0 %756
    %760 = vset.pattern.permute.xlu0 0
    %761 = vperm.xlu0 %760, %v695
    %v762 = vpop.permute.xlu0 %761
    %765 = vset.pattern.permute.xlu0 0
    %766 = vperm.xlu0 %765, %v696
    %v767 = vpop.permute.xlu0 %766
    %770 = vset.pattern.permute.xlu0 0
    %771 = vperm.xlu0 %770, %v697
    %v772 = vpop.permute.xlu0 %771
    %775 = vset.pattern.permute.xlu0 0
    %776 = vperm.xlu0 %775, %v698
    %v777 = vpop.permute.xlu0 %776
    %v779 = vadd.f32 %v621, %v702
    %v780 = vadd.f32 %v624, %v707
    %v781 = vadd.f32 %v629, %v712
    %v782 = vadd.f32 %v632, %v717
    %v783 = vadd.f32 %v637, %v722
    %v784 = vadd.f32 %v640, %v727
    %v785 = vadd.f32 %v645, %v732
    %v786 = vadd.f32 %v648, %v737
    %v787 = vadd.f32 %v653, %v742
    %v788 = vadd.f32 %v656, %v747
    %v789 = vadd.f32 %v661, %v752
    %v790 = vadd.f32 %v664, %v757
    %v791 = vadd.f32 %v669, %v762
    %v792 = vadd.f32 %v672, %v767
    %v793 = vadd.f32 %v677, %v772
    %v794 = vadd.f32 %v680, %v777
    %v795 = vmax.f32 %v779, 0.0
    %v796 = vmax.f32 %v780, 0.0
    %v797 = vmax.f32 %v781, 0.0
    %v798 = vmax.f32 %v782, 0.0
    %v799 = vmax.f32 %v783, 0.0
    %v800 = vmax.f32 %v784, 0.0
    %v801 = vmax.f32 %v785, 0.0
    %v802 = vmax.f32 %v786, 0.0
    %v803 = vmax.f32 %v787, 0.0
    %v804 = vmax.f32 %v788, 0.0
    %v805 = vmax.f32 %v789, 0.0
    %v806 = vmax.f32 %v790, 0.0
    %v807 = vmax.f32 %v791, 0.0
    %v808 = vmax.f32 %v792, 0.0
    %v809 = vmax.f32 %v793, 0.0
    %v810 = vmax.f32 %v794, 0.0
    %v811 = vld [vmem:[%s4] sm:$0xff]
    %v812 = vld [vmem:[%s4 + $0x8] sm:$0xff]
    %v813 = vld [vmem:[%s4 + $0x10] sm:$0xff]
    %v814 = vld [vmem:[%s4 + $0x18] sm:$0xff]
    %v815 = vld [vmem:[%s4 + $0x20] sm:$0xff]
    %v816 = vld [vmem:[%s4 + $0x28] sm:$0xff]
    %v817 = vld [vmem:[%s4 + $0x30] sm:$0xff]
    %v818 = vld [vmem:[%s4 + $0x38] sm:$0xff]
    %v819 = vld [vmem:[%s4 + $0x40] sm:$0xff]
    %v820 = vld [vmem:[%s4 + $0x48] sm:$0xff]
    %v821 = vld [vmem:[%s4 + $0x50] sm:$0xff]
    %v822 = vld [vmem:[%s4 + $0x58] sm:$0xff]
    %v823 = vld [vmem:[%s4 + $0x60] sm:$0xff]
    %v824 = vld [vmem:[%s4 + $0x68] sm:$0xff]
    %v825 = vld [vmem:[%s4 + $0x70] sm:$0xff]
    %v826 = vld [vmem:[%s4 + $0x78] sm:$0xff]
    %828 = vset.pattern.permute.xlu0 0
    %829 = vperm.xlu0 %828, %v811
    %v830 = vpop.permute.xlu0 %829
    %833 = vset.pattern.permute.xlu0 0
    %834 = vperm.xlu0 %833, %v812
    %v835 = vpop.permute.xlu0 %834
    %838 = vset.pattern.permute.xlu0 0
    %839 = vperm.xlu0 %838, %v813
    %v840 = vpop.permute.xlu0 %839
    %843 = vset.pattern.permute.xlu0 0
    %844 = vperm.xlu0 %843, %v814
    %v845 = vpop.permute.xlu0 %844
    %848 = vset.pattern.permute.xlu0 0
    %849 = vperm.xlu0 %848, %v815
    %v850 = vpop.permute.xlu0 %849
    %853 = vset.pattern.permute.xlu0 0
    %854 = vperm.xlu0 %853, %v816
    %v855 = vpop.permute.xlu0 %854
    %858 = vset.pattern.permute.xlu0 0
    %859 = vperm.xlu0 %858, %v817
    %v860 = vpop.permute.xlu0 %859
    %863 = vset.pattern.permute.xlu0 0
    %864 = vperm.xlu0 %863, %v818
    %v865 = vpop.permute.xlu0 %864
    %868 = vset.pattern.permute.xlu0 0
    %869 = vperm.xlu0 %868, %v819
    %v870 = vpop.permute.xlu0 %869
    %873 = vset.pattern.permute.xlu0 0
    %874 = vperm.xlu0 %873, %v820
    %v875 = vpop.permute.xlu0 %874
    %878 = vset.pattern.permute.xlu0 0
    %879 = vperm.xlu0 %878, %v821
    %v880 = vpop.permute.xlu0 %879
    %883 = vset.pattern.permute.xlu0 0
    %884 = vperm.xlu0 %883, %v822
    %v885 = vpop.permute.xlu0 %884
    %888 = vset.pattern.permute.xlu0 0
    %889 = vperm.xlu0 %888, %v823
    %v890 = vpop.permute.xlu0 %889
    %893 = vset.pattern.permute.xlu0 0
    %894 = vperm.xlu0 %893, %v824
    %v895 = vpop.permute.xlu0 %894
    %898 = vset.pattern.permute.xlu0 0
    %899 = vperm.xlu0 %898, %v825
    %v900 = vpop.permute.xlu0 %899
    %903 = vset.pattern.permute.xlu0 0
    %904 = vperm.xlu0 %903, %v826
    %v905 = vpop.permute.xlu0 %904
    %v907 = vmul.f32 %v795, %v830
    %v908 = vmul.f32 %v796, %v835
    %v909 = vmul.f32 %v797, %v840
    %v910 = vmul.f32 %v798, %v845
    %v911 = vmul.f32 %v799, %v850
    %v912 = vmul.f32 %v800, %v855
    %v913 = vmul.f32 %v801, %v860
    %v914 = vmul.f32 %v802, %v865
    %v915 = vmul.f32 %v803, %v870
    %v916 = vmul.f32 %v804, %v875
    %v917 = vmul.f32 %v805, %v880
    %v918 = vmul.f32 %v806, %v885
    %v919 = vmul.f32 %v807, %v890
    %v920 = vmul.f32 %v808, %v895
    %v921 = vmul.f32 %v809, %v900
    %v922 = vmul.f32 %v810, %v905
    %v923 = vadd.f32 %v907, %v908
    %v924 = vadd.f32 %v923, %v909
    %v925 = vadd.f32 %v924, %v910
    %v926 = vadd.f32 %v925, %v911
    %v927 = vadd.f32 %v926, %v912
    %v928 = vadd.f32 %v927, %v913
    %v929 = vadd.f32 %v928, %v914
    %v930 = vadd.f32 %v929, %v915
    %v931 = vadd.f32 %v930, %v916
    %v932 = vadd.f32 %v931, %v917
    %v933 = vadd.f32 %v932, %v918
    %v934 = vadd.f32 %v933, %v919
    %v935 = vadd.f32 %v934, %v920
    %v936 = vadd.f32 %v935, %v921
    %v937 = vadd.f32 %v936, %v922
    %v938 = vrot.slane %v937, 4
    %v939 = vadd.f32 %v937, %v938
    %v940 = vrot.slane %v939, 2
    %v941 = vadd.f32 %v939, %v940
    %v942 = vrot.slane %v941, 1
    %v943 = vadd.f32 %v941, %v942
    %v944 = vld [vmem:[#allocation2] sm:$0x1]
    %946 = vset.pattern.permute.xlu0 0
    %947 = vperm.xlu0 %946, %v944
    %v948 = vpop.permute.xlu0 %947
    %v950 = vlaneseq
    %v951 = vshrl.u32 %v950, 7
    %v952 = vsub.s32 0, %v951
    %v953 = vrot.slane %v948, %v952
    %v954 = vadd.f32 %v943, %v953
    %955 = vst [vmem:[#allocation3] sm:$0x1] %v954
    // Predicated region
    $region34: #{tpu_custom_call.1} parent=1 // pred_check
      _
    $region35: #{tpu_custom_call.1} parent=1 // pred_check_branch
      %957 = sbr.rel (0) target = $region37
    $region36: #{tpu_custom_call.1} parent=1 // pred_region
      %s959 = ssub.s32 16, 16
      %960 = vsyncadd [#allocation4], %s959
      %s962 = sshll.u32 [#allocation3], 4
      %s963 = int_to_ptr.vmem [resolvable:$true] %s962
      %965 = dma.vmem_to_hbm [thread:$0]  %s963, 16, %s8, [#allocation4]
    $region37: #{tpu_custom_call.1} parent=1 // pred_fallthru
      _
    // Predicated region
    $region38: #{tpu_custom_call.1} parent=1 // pred_check
      _
    $region39: #{tpu_custom_call.1} parent=1 // pred_check_branch
      %967 = sbr.rel (0) target = $region41
    $region40: #{tpu_custom_call.1} parent=1 // pred_region
      %968 = dma.done [#allocation4], 16
    $region41: #{tpu_custom_call.1} parent=1 // pred_fallthru
      _
    %969 = vsyncpa [#allocation4], 1

</llo_original>
